<compile_context>
chip_gen: v7x
topology: tpu7x:2x2x1
jax: 0.10.0
libtpu: 0.0.40
codegen_flags: <defaults>
</compile_context>

<pallas_src>
import functools
import math
import re

import jax
import jax.numpy as jnp
from jax.experimental import pallas as pl
from jax.experimental.pallas import tpu as pltpu


EMBED_DIM = 50  # fixed in the module (__init__: self.embedding_dim = 50)


def _round_up(a, b):
    return (a + b - 1) // b * b


def _chip_supports_bf16_vpu():
    """bf16 VPU/EUP exists on v6e / v7x; v5e and older should stay f32."""
    try:
        kind = jax.devices()[0].device_kind
    except Exception:
        return False
    m = re.search(r"(\d+)", kind)
    return bool(m) and int(m.group(1)) >= 6


# ---------------------------------------------------------------------------
# Kernel 1: hoisted input projection  Xproj = X @ W_ih^T + (b_ih + b_hh)
# ---------------------------------------------------------------------------
def _input_proj_kernel(x_ref, w_ref, b_ref, o_ref):
    acc = jnp.dot(x_ref[...], w_ref[...], preferred_element_type=jnp.float32)
    o_ref[...] = (acc + b_ref[...]).astype(o_ref.dtype)


def _input_projection(x2d, wih_t, bias):
    """(M, E_pad) @ (E_pad, 4H) + (1, 4H) -> (M, 4H) f32, row-tiled GEMM."""
    M, E_pad = x2d.shape
    G = wih_t.shape[1]

    # Memory-bound GEMM (K = E_pad = 64): use large row tiles, but pick the
    # tile so row padding stays minimal.
    TM_MAX = 512
    nb_m = -(-M // TM_MAX)
    TM = _round_up(-(-M // nb_m), 8)
    M_pad = nb_m * TM
    if M_pad != M:
        x2d = jnp.pad(x2d, ((0, M_pad - M), (0, 0)))

    out = pl.pallas_call(
        _input_proj_kernel,
        out_shape=jax.ShapeDtypeStruct((M_pad, G), jnp.float32),
        grid_spec=pltpu.PrefetchScalarGridSpec(
            num_scalar_prefetch=0,
            grid=(nb_m,),
            in_specs=[
                pl.BlockSpec((TM, E_pad), lambda i: (i, 0)),
                pl.BlockSpec((E_pad, G), lambda i: (0, 0)),
                pl.BlockSpec((1, G), lambda i: (0, 0)),
            ],
            out_specs=pl.BlockSpec((TM, G), lambda i: (i, 0)),
        ),
        compiler_params=pltpu.CompilerParams(
            dimension_semantics=("parallel",),
        ),
    )(x2d, wih_t, bias)
    return out[:M]


# ---------------------------------------------------------------------------
# Kernel 2: blocked-time LSTM recurrence
# ---------------------------------------------------------------------------
def _lstm_recurrent_kernel(xproj_ref, whh_ref, h_out_ref, h_scr, c_scr, *,
                           batch, hidden, steps_per_block, seq_len, mask_tail,
                           mm_dtype):
    """One grid step == `steps_per_block` LSTM time steps.

    xproj_ref : (TT*B, 4H) f32  sublane-dense precomputed x@W_ih^T + bias
    whh_ref   : (H, 4H)         W_hh^T (f32 or bf16), resident across blocks
    h_out_ref : (B, H)          final hidden state (written on last block)
    h_scr/c_scr: (B, H) f32     recurrent state carried across time blocks
    """
    B, H = batch, hidden
    blk = pl.program_id(0)

    @pl.when(blk == 0)
    def _():
        h_scr[...] = jnp.zeros_like(h_scr)
        c_scr[...] = jnp.zeros_like(c_scr)

    whh = whh_ref[...]  # hoisted: single VMEM load for the whole block
    h = h_scr[...]
    c = c_scr[...]

    # TODO(synk): shave per-step weight-push latency by staging W_hh in the
    # MXU across the block (pltpu.matmul_push_rhs / matmul_acc_lhs /
    # matmul_pop) instead of re-feeding the RHS through jnp.dot every step.
    for s in range(steps_per_block):  # full unroll; static sublane slices
        xp = xproj_ref[pl.ds(s * B, B), :]               # (B, 4H) f32
        # Only the h @ W_hh^T matmul is on the serial critical chain.
        gates = xp + jnp.dot(h.astype(mm_dtype), whh,
                             preferred_element_type=jnp.float32)
        if 4 * H <= 128:
            # 4H fits one vreg: full-width sigmoid+tanh (EUP) then static
            # lane-window slices is cheapest.
            sig = jax.nn.sigmoid(gates)
            th = jnp.tanh(gates)
            i_g = sig[:, 0 * H:1 * H]
            f_g = sig[:, 1 * H:2 * H]
            g_g = th[:, 2 * H:3 * H]
            o_g = sig[:, 3 * H:4 * H]
        else:
            # Larger H: per-gate transcendentals to avoid doubling EUP work
            # on the serial chain.
            i_g = jax.nn.sigmoid(gates[:, 0 * H:1 * H])
            f_g = jax.nn.sigmoid(gates[:, 1 * H:2 * H])
            g_g = jnp.tanh(gates[:, 2 * H:3 * H])
            o_g = jax.nn.sigmoid(gates[:, 3 * H:4 * H])
        c_new = f_g * c + i_g * g_g
        h_new = o_g * jnp.tanh(c_new)
        if mask_tail:  # static Python flag; only traced when T_pad != T
            valid = blk * steps_per_block + s < seq_len
            h_new = jnp.where(valid, h_new, h)
            c_new = jnp.where(valid, c_new, c)
        h, c = h_new, c_new

    h_scr[...] = h
    c_scr[...] = c

    @pl.when(blk == pl.num_programs(0) - 1)
    def _():
        h_out_ref[...] = h.astype(h_out_ref.dtype)


# ---------------------------------------------------------------------------
# Wrapper: Pallas equivalent of BiLSTM.forward
# ---------------------------------------------------------------------------
def bilstm_forward(token_ids, t_lens, emb_weights, w_ih, w_hh, b_ih, b_hh,
                   hidden_size, *, use_bf16_matmul=False):
    """Returns final_h of shape (1, B, H), matching the PyTorch module."""
    del t_lens  # the reference forward ignores it
    B, T = token_ids.shape
    if T < 1:
        raise ValueError("sequence length must be >= 1")
    E = emb_weights.shape[1]
    H = hidden_size
    G = 4 * H

    # bf16 MXU operands only where the chip has a bf16 VPU (v6e/v7x); on v5e
    # and older f32 is strictly better here (review).  Accumulation / state /
    # gate math / stored xproj stay f32 regardless.
    mm_dtype = (jnp.bfloat16
                if (use_bf16_matmul and _chip_supports_bf16_vpu())
                else jnp.float32)

    # Embedding gather (glue, plain JAX), directly in (T, B, E) order so no
    # separate activation transpose; padding row 0 is zero in the table.
    x = emb_weights.astype(mm_dtype)[token_ids.T]            # (T, B, E)
    x2d = x.reshape(T * B, E)

    # Zero-pad the contraction dim E (50 -> 64) for a clean K layout.
    E_pad = _round_up(max(E, 1), 64)
    if E_pad != E:
        x2d = jnp.pad(x2d, ((0, 0), (0, E_pad - E)))

    wih_t = jnp.transpose(w_ih).astype(jnp.float32)          # (E, 4H)
    wih_t = jnp.pad(wih_t, ((0, E_pad - E), (0, 0)))         # (E_pad, 4H)
    bias = (b_ih + b_hh).reshape(1, G).astype(jnp.float32)

    # Hoisted input projection: one MXU-shaped GEMM, bias folded in, f32 out.
    xproj = _input_projection(x2d, wih_t.astype(mm_dtype), bias)  # (T*B, 4H)

    # ---- time-block size: large (amortize ~600-cycle grid-step overhead)
    # and (near-)tail-free so we don't execute masked no-op steps. ----------
    TT_MAX = 128
    nb = -(-T // TT_MAX)
    TT = -(-T // nb)
    if nb > 1:
        # keep the streamed block (TT*B, 4H) sublane-aligned
        TT = _round_up(TT, 8 // math.gcd(B, 8))
        nb = -(-T // TT)
    T_pad = nb * TT
    mask_tail = (T_pad != T)
    if mask_tail:
        xproj = jnp.pad(xproj, ((0, (T_pad - T) * B), (0, 0)))  # (T_pad*B, 4H)

    whh_t = jnp.transpose(w_hh).astype(mm_dtype)             # (H, 4H)

    kernel = functools.partial(
        _lstm_recurrent_kernel, batch=B, hidden=H, steps_per_block=TT,
        seq_len=T, mask_tail=mask_tail, mm_dtype=mm_dtype)

    final_h = pl.pallas_call(
        kernel,
        out_shape=jax.ShapeDtypeStruct((B, H), jnp.float32),
        grid_spec=pltpu.PrefetchScalarGridSpec(
            num_scalar_prefetch=0,
            grid=(nb,),
            in_specs=[
                # xproj streams as a sublane-dense 2D block (double-buffered
                # by BlockSpec); W_hh^T stays resident across blocks.
                pl.BlockSpec((TT * B, G), lambda b: (b, 0)),
                pl.BlockSpec((H, G), lambda b: (0, 0)),
            ],
            out_specs=pl.BlockSpec((B, H), lambda b: (0, 0)),
            scratch_shapes=[
                pltpu.VMEM((B, H), jnp.float32),   # h state
                pltpu.VMEM((B, H), jnp.float32),   # c state
            ],
        ),
        compiler_params=pltpu.CompilerParams(
            dimension_semantics=("arbitrary",),    # serial recurrence
            # Explicit VMEM budget (per review): double-buffered xproj blocks
            # are ~TT*B*4H*4B*2 -- far below this on every generation incl.
            # v7x's 64 MiB physical VMEM, but keep the limit visible.
            vmem_limit_bytes=32 * 1024 * 1024,
        ),
    )(xproj, whh_t)

    # TODO(synk): module is named BiLSTM but nn.LSTM is built with
    # bidirectional=False; if a backward direction is ever added, run it as a
    # second reversed recurrence stacked along the batch axis (fills the idle
    # f32 sublanes) and, on v7x, map it to the second TensorCore via a
    # leading size-2 "parallel" grid axis.
    return final_h.reshape(1, B, H)


# ---------------------------------------------------------------------------
# Pure-JAX reference (sanity check)
# ---------------------------------------------------------------------------
def _reference_lstm(x, w_ih, w_hh, b_ih, b_hh, H):
    B, T, E = x.shape
    h = jnp.zeros((B, H), jnp.float32)
    c = jnp.zeros((B, H), jnp.float32)
    for t in range(T):
        gates = x[:, t, :] @ w_ih.T + h @ w_hh.T + b_ih + b_hh
        i = jax.nn.sigmoid(gates[:, 0 * H:1 * H])
        f = jax.nn.sigmoid(gates[:, 1 * H:2 * H])
        g = jnp.tanh(gates[:, 2 * H:3 * H])
        o = jax.nn.sigmoid(gates[:, 3 * H:4 * H])
        c = f * c + i * g
        h = o * jnp.tanh(c)
    return h.reshape(1, B, H)


if __name__ == "__main__":
    VOCAB = 100
    B, H, E = 2, 32, EMBED_DIM

    key = jax.random.PRNGKey(0)
    k_emb, k_wih, k_whh, k_bih, k_bhh, k1, k2, k3 = jax.random.split(key, 8)

    # Embedding table (padding_idx=0 -> zero row).
    emb_weights = 0.1 * jax.random.normal(k_emb, (VOCAB, E), jnp.float32)
    emb_weights = emb_weights.at[0].set(0.0)

    # LSTM parameters (PyTorch shapes: (4H, E), (4H, H), (4H,), (4H,)).
    scale = 1.0 / jnp.sqrt(jnp.float32(H))
    w_ih = scale * jax.random.normal(k_wih, (4 * H, E), jnp.float32)
    w_hh = scale * jax.random.normal(k_whh, (4 * H, H), jnp.float32)
    b_ih = scale * jax.random.normal(k_bih, (4 * H,), jnp.float32)
    b_hh = scale * jax.random.normal(k_bhh, (4 * H,), jnp.float32)

    # --- config 1: small sequence (single tail-free block), f32 ------------
    T1 = 8
    ids1 = jax.random.randint(k1, (B, T1), 0, VOCAB, jnp.int32)
    lens1 = jnp.array([T1, T1 - 2], jnp.int32)   # ignored, as in the reference
    out1 = jax.block_until_ready(
        bilstm_forward(ids1, lens1, emb_weights, w_ih, w_hh, b_ih, b_hh,
                       hidden_size=H))
    ref1 = _reference_lstm(emb_weights[ids1], w_ih, w_hh, b_ih, b_hh, H)
    assert out1.shape == (1, B, H)
    assert jnp.allclose(out1, ref1, atol=1e-3, rtol=1e-3), \
        float(jnp.max(jnp.abs(out1 - ref1)))

    # --- config 2: T=40 -> now a single tail-free block (no masked steps) --
    T2 = 40
    ids2 = jax.random.randint(k2, (B, T2), 0, VOCAB, jnp.int32)
    lens2 = jnp.array([T2, T2], jnp.int32)
    out2 = jax.block_until_ready(
        bilstm_forward(ids2, lens2, emb_weights, w_ih, w_hh, b_ih, b_hh,
                       hidden_size=H))
    ref2 = _reference_lstm(emb_weights[ids2], w_ih, w_hh, b_ih, b_hh, H)
    assert jnp.allclose(out2, ref2, atol=1e-3, rtol=1e-3), \
        float(jnp.max(jnp.abs(out2 - ref2)))

    # --- config 3: long sequence -> multiple time blocks + masked tail -----
    T3 = 150
    ids3 = jax.random.randint(k3, (B, T3), 0, VOCAB, jnp.int32)
    lens3 = jnp.array([T3, T3], jnp.int32)
    out3 = jax.block_until_ready(
        bilstm_forward(ids3, lens3, emb_weights, w_ih, w_hh, b_ih, b_hh,
                       hidden_size=H))
    ref3 = _reference_lstm(emb_weights[ids3], w_ih, w_hh, b_ih, b_hh, H)
    assert jnp.allclose(out3, ref3, atol=2e-3, rtol=2e-3), \
        float(jnp.max(jnp.abs(out3 - ref3)))

    # --- bf16 MXU operands (auto-gated off on chips without bf16 VPU) ------
    out1_bf16 = jax.block_until_ready(
        bilstm_forward(ids1, lens1, emb_weights, w_ih, w_hh, b_ih, b_hh,
                       hidden_size=H, use_bf16_matmul=True))
    assert jnp.allclose(out1_bf16, ref1, atol=5e-2, rtol=5e-2)

    print("KERNEL_OK")
</pallas_src>

<mosaic_0001>
module attributes {stable_mosaic.version = 11 : i64} {
  func.func @_input_proj_kernel(%arg0: i32, %arg1: memref<16x64xf32, #tpu.memory_space<vmem>>, %arg2: memref<64x128xf32, #tpu.memory_space<vmem>>, %arg3: memref<1x128xf32, #tpu.memory_space<vmem>>, %arg4: memref<16x128xf32, #tpu.memory_space<vmem>>) attributes {dimension_semantics = [#tpu.dimension_semantics<parallel>], iteration_bounds = array<i64: 1>, scalar_prefetch = 0 : i64, scratch_operands = 0 : i64, tpu.core_type = #tpu.core_type<tc>, window_params = [{transform_indices = @transform_0, window_bounds = array<i64: 16, 64>}, {pipeline_mode = #tpu.pipeline_mode<synchronous>, transform_indices = @transform_1, window_bounds = array<i64: 64, 128>}, {pipeline_mode = #tpu.pipeline_mode<synchronous>, transform_indices = @transform_2, window_bounds = array<i64: 1, 128>}, {transform_indices = @transform_3, window_bounds = array<i64: 16, 128>}]} {
    %c0 = arith.constant 0 : index
    %c0_0 = arith.constant 0 : index
    %0 = vector.load %arg1[%c0, %c0_0] : memref<16x64xf32, #tpu.memory_space<vmem>>, vector<16x64xf32>
    %c0_1 = arith.constant 0 : index
    %c0_2 = arith.constant 0 : index
    %1 = vector.load %arg2[%c0_1, %c0_2] : memref<64x128xf32, #tpu.memory_space<vmem>>, vector<64x128xf32>
    %cst = arith.constant dense<0.000000e+00> : vector<16x128xf32>
    %2 = tpu.matmul %0, %1, %cst {dimension_numbers = #tpu.dot_dimension_numbers<[1], [0], [0], [1], [0, 0, 1, 1], [], []>} : vector<16x64xf32>, vector<64x128xf32>, vector<16x128xf32> -> vector<16x128xf32>
    %c0_3 = arith.constant 0 : index
    %c0_4 = arith.constant 0 : index
    %3 = vector.load %arg3[%c0_3, %c0_4] : memref<1x128xf32, #tpu.memory_space<vmem>>, vector<1x128xf32>
    %4 = vector.broadcast %3 : vector<1x128xf32> to vector<16x128xf32>
    %5 = arith.addf %2, %4 : vector<16x128xf32>
    %c0_5 = arith.constant 0 : index
    %c0_6 = arith.constant 0 : index
    %6 = vector.load %arg4[%c0_5, %c0_6] : memref<16x128xf32, #tpu.memory_space<vmem>>, vector<16x128xf32>
    tpu.vector_store %arg4[%c0_5, %c0_6], %5 {strides = array<i32>} : memref<16x128xf32, #tpu.memory_space<vmem>>, vector<16x128xf32>,
    return
  }
  func.func @transform_0(%arg0: i32) -> (i32, i32) {
    %c0_i32 = arith.constant 0 : i32
    %c0_i32_0 = arith.constant 0 : i32
    return %arg0, %c0_i32 : i32, i32
  }
  func.func @transform_1(%arg0: i32) -> (i32, i32) {
    %c0_i32 = arith.constant 0 : i32
    %c0_i32_0 = arith.constant 0 : i32
    %c0_i32_1 = arith.constant 0 : i32
    return %c0_i32, %c0_i32_0 : i32, i32
  }
  func.func @transform_2(%arg0: i32) -> (i32, i32) {
    %c0_i32 = arith.constant 0 : i32
    %c0_i32_0 = arith.constant 0 : i32
    %c0_i32_1 = arith.constant 0 : i32
    return %c0_i32, %c0_i32_0 : i32, i32
  }
  func.func @transform_3(%arg0: i32) -> (i32, i32) {
    %c0_i32 = arith.constant 0 : i32
    %c0_i32_0 = arith.constant 0 : i32
    return %arg0, %c0_i32 : i32, i32
  }
}

</mosaic_0001>

<llo_original>
// kernel: tpu_custom_call.1
$region0: #{tpu_custom_call.1}
  #allocation0 [shape = 'u32[]', space=smem, size = 0x4, offset = 0x4, fixed_abs, tag = 'smem constant byte address 0x4 - core index']
  #allocation1 [shape = 'u32[144,128]{1,0:T(1,128)}', space=vmem, size = 0x12000, scoped, tag = 'internal scratch']
  %s0 = inlined_call_operand.hbm [shape: f32[16,64], index: 0, kind: input, shape index: {}]
  %s1 = inlined_call_operand.hbm [shape: f32[64,128], index: 1, kind: input, shape index: {}]
  %s2 = inlined_call_operand.vmem [shape: f32[1,128], index: 2, kind: input, shape index: {}]
  %s3 = inlined_call_operand.hbm [shape: f32[16,128], index: 3, kind: output, shape index: {}]
  %s4 = sld [smem:[#allocation0]]
  $region30: #{tpu_custom_call.1} parent=0
    _
  %s6 = ssub.s32 1, %s4
  %s7 = scalar_select 0, %s6, %s4
  $region1: #{tpu_custom_call.1} parent=0
    #allocation2 [shape = 'u8[8192]{0}', space=vmem, size = 0x2000, scoped, tag = 'input window, operand 0, single buffered']
    #allocation3 [shape = 's32[1]{0}', space=sflag, size = 0x4, scoped, tag = 'scoped memory for tpu_custom_call.1']
    #allocation4 [shape = 's32[1]{0}', space=sflag, size = 0x4, scoped, tag = 'scoped memory for tpu_custom_call.1']
    #allocation5 [shape = 'u8[32768]{0}', space=vmem, size = 0x8000, scoped, tag = 'input window, operand 1, single buffered']
    #allocation6 [shape = 's32[1]{0}', space=sflag, size = 0x4, scoped, tag = 'scoped memory for tpu_custom_call.1']
    #allocation7 [shape = 'u8[8192]{0}', space=vmem, size = 0x2000, scoped, tag = 'output window, operand 0, single buffered']
    %8 = vsyncpa [#allocation3], 0
    %9 = vsyncpa [#allocation6], 0
    %10 = vsyncpa [#allocation4], 0
    // Predicated region
    $region2: #{tpu_custom_call.1} parent=1 // pred_check
      _
    $region3: #{tpu_custom_call.1} parent=1 // pred_check_branch
      %12 = sbr.rel (0) target = $region5
    $region4: #{tpu_custom_call.1} parent=1 // pred_region
      %s14 = ssub.s32 256, 256
      %15 = vsyncadd [#allocation3], %s14
      %s16 = sshll.u32 [#allocation2], 4
      %s17 = int_to_ptr.vmem [resolvable:$true] %s16
      %22 = dma.hbm_to_vmem [thread:$0]  %s0, 256, %s17, [#allocation3], 128, 128, 8
    $region5: #{tpu_custom_call.1} parent=1 // pred_fallthru
      _
    // Predicated region
    $region6: #{tpu_custom_call.1} parent=1 // pred_check
      _
    $region7: #{tpu_custom_call.1} parent=1 // pred_check_branch
      %24 = sbr.rel (0) target = $region9
    $region8: #{tpu_custom_call.1} parent=1 // pred_region
      %s26 = ssub.s32 1024, 1024
      %27 = vsyncadd [#allocation6], %s26
      %s28 = sshll.u32 [#allocation5], 4
      %s29 = int_to_ptr.vmem [resolvable:$true] %s28
      %34 = dma.hbm_to_vmem [thread:$0]  %s1, 1024, %s29, [#allocation6], 128, 128, 8
    $region9: #{tpu_custom_call.1} parent=1 // pred_fallthru
      _
    // Predicated region
    $region10: #{tpu_custom_call.1} parent=1 // pred_check
      _
    $region11: #{tpu_custom_call.1} parent=1 // pred_check_branch
      %36 = sbr.rel (0) target = $region13
    $region12: #{tpu_custom_call.1} parent=1 // pred_region
      _
    $region13: #{tpu_custom_call.1} parent=1 // pred_fallthru
      _
    // Predicated region
    $region14: #{tpu_custom_call.1} parent=1 // pred_check
      _
    $region15: #{tpu_custom_call.1} parent=1 // pred_check_branch
      %38 = sbr.rel (0) target = $region17
    $region16: #{tpu_custom_call.1} parent=1 // pred_region
      %39 = dma.done [#allocation3], 256
    $region17: #{tpu_custom_call.1} parent=1 // pred_fallthru
      _
    // Predicated region
    $region18: #{tpu_custom_call.1} parent=1 // pred_check
      _
    $region19: #{tpu_custom_call.1} parent=1 // pred_check_branch
      %41 = sbr.rel (0) target = $region21
    $region20: #{tpu_custom_call.1} parent=1 // pred_region
      %42 = dma.done [#allocation6], 1024
    $region21: #{tpu_custom_call.1} parent=1 // pred_fallthru
      _
    %v43 = vld [vmem:[#allocation2] sm:$0xff]
    %v44 = vld [vmem:[#allocation2 + $0x8] sm:$0xff]
    %v45 = vld [vmem:[#allocation5] sm:$0xff]
    %v46 = vld [vmem:[#allocation5 + $0x8] sm:$0xff]
    %v47 = vld [vmem:[#allocation5 + $0x10] sm:$0xff]
    %v48 = vld [vmem:[#allocation5 + $0x18] sm:$0xff]
    %v49 = vld [vmem:[#allocation5 + $0x20] sm:$0xff]
    %v50 = vld [vmem:[#allocation5 + $0x28] sm:$0xff]
    %v51 = vld [vmem:[#allocation5 + $0x30] sm:$0xff]
    %v52 = vld [vmem:[#allocation5 + $0x38] sm:$0xff]
    %v53 = vld [vmem:[%s2] sm:$0x1]
    %v55 = vlaneseq
    %v56 = vshrl.u32 %v55, 7
    %v57 = vsub.s32 0, %v56
    %v58 = vrot.slane %v53, %v57
    %vm60 = vcmask 523264
    %v62 = vsel %vm60, %v43, 0
    %v65 = vsel %vm60, %v44, 0
    %67 = vmatprep.subr.mxu0 0.0
    %68 = vmatpush1.msra.mxu0 %v45
    %69 = vmatprep.subr.mxu0 0.0
    %70 = vmatpush1.msra.mxu0 %v46
    %71 = vmatprep.subr.mxu0 0.0
    %72 = vmatpush1.msra.mxu0 %v47
    %73 = vmatprep.subr.mxu0 0.0
    %74 = vmatpush1.msra.mxu0 %v48
    %75 = vmatprep.subr.mxu0 0.0
    %76 = vmatpush1.msra.mxu0 %v49
    %77 = vmatprep.subr.mxu0 0.0
    %78 = vmatpush1.msra.mxu0 %v50
    %79 = vmatprep.subr.mxu0 0.0
    %80 = vmatpush1.msra.mxu0 %v51
    %81 = vmatprep.subr.mxu0 0.0
    %82 = vmatpush1.msra.mxu0 %v52
    %83 = vmatprep.subr.mxu0 0.0
    %84 = vmatpush1.msra.mxu0 0.0
    %85 = vmatprep.subr.mxu0 0.0
    %86 = vmatpush1.msra.mxu0 0.0
    %87 = vmatprep.subr.mxu0 0.0
    %88 = vmatpush1.msra.mxu0 0.0
    %89 = vmatprep.subr.mxu0 0.0
    %90 = vmatpush1.msra.mxu0 0.0
    %91 = vmatprep.subr.mxu0 0.0
    %92 = vmatpush1.msra.mxu0 0.0
    %93 = vmatprep.subr.mxu0 0.0
    %94 = vmatpush1.msra.mxu0 0.0
    %95 = vmatprep.subr.mxu0 0.0
    %96 = vmatpush1.msra.mxu0 0.0
    %97 = vmatprep.subr.mxu0 0.0
    %98 = vmatpush1.msra.mxu0 0.0
    %99 = vmatprep.subr.mxu0 0.0
    %100 = vmatpush1.msra.mxu0 0.0
    %101 = vmatprep.subr.mxu0 0.0
    %102 = vmatpush1.msra.mxu0 0.0
    %103 = vmatprep.subr.mxu0 0.0
    %104 = vmatpush1.msra.mxu0 0.0
    %105 = vmatprep.subr.mxu0 0.0
    %106 = vmatpush1.msra.mxu0 0.0
    %107 = vmatprep.subr.mxu0 0.0
    %108 = vmatpush1.msra.mxu0 0.0
    %109 = vmatprep.subr.mxu0 0.0
    %110 = vmatpush1.msra.mxu0 0.0
    %111 = vmatprep.subr.mxu0 0.0
    %112 = vmatpush1.msra.mxu0 0.0
    %113 = vmatprep.subr.mxu0 0.0
    %114 = vmatpush1.msra.mxu0 0.0
    %115 = vmatprep.subr.mxu0 0.0
    %116 = vmatpush1.msra.mxu0 0.0
    %117 = vmatprep.subr.mxu0 0.0
    %118 = vmatpush1.msra.mxu0 0.0
    %119 = vmatprep.subr.mxu0 0.0
    %120 = vmatpush1.msra.mxu0 0.0
    %121 = vmatprep.subr.mxu0 0.0
    %122 = vmatpush1.msra.mxu0 0.0
    %123 = vmatprep.subr.mxu0 0.0
    %124 = vmatpush1.msra.mxu0 0.0
    %125 = vmatprep.subr.mxu0 0.0
    %126 = vmatpush1.msra.mxu0 0.0
    %127 = vmatprep.subr.mxu0 0.0
    %128 = vmatpush1.msra.mxu0 0.0
    %129 = vmatprep.subr.mxu0 0.0
    %130 = vmatpush1.msra.mxu0 0.0
    %131 = vmatprep.mubr.f32.mxu0 0.0
    %132 = vmatmul.mubr.f32.gmra.mrb[0].mxu0 %v62
    %v133 = vpop.f32.mrb[0].mxu0
    %v134 = vadd.f32 %v58, %v133
    %v135 = vpop.f32.mrb[0].mxu0
    %136 = vmatprep.mubr.f32.mxu0 0.0
    %137 = vmatmul.mubr.f32.gmra.mrb[0].mxu0 %v65
    %v138 = vpop.f32.mrb[0].mxu0
    %v139 = vadd.f32 %v58, %v138
    %v140 = vpop.f32.mrb[0].mxu0
    %141 = vdwg.mxu0
    %142 = vst [vmem:[#allocation7] sm:$0xff] %v134
    %143 = vst [vmem:[#allocation7 + $0x8] sm:$0xff] %v139
    // Predicated region
    $region22: #{tpu_custom_call.1} parent=1 // pred_check
      _
    $region23: #{tpu_custom_call.1} parent=1 // pred_check_branch
      %145 = sbr.rel (0) target = $region25
    $region24: #{tpu_custom_call.1} parent=1 // pred_region
      %s147 = ssub.s32 256, 256
      %148 = vsyncadd [#allocation4], %s147
      %s149 = sshll.u32 [#allocation7], 4
      %s150 = int_to_ptr.vmem [resolvable:$true] %s149
      %155 = dma.vmem_to_hbm [thread:$0]  %s150, 256, %s3, [#allocation4], 128, 128, 8
    $region25: #{tpu_custom_call.1} parent=1 // pred_fallthru
      _
    // Predicated region
    $region26: #{tpu_custom_call.1} parent=1 // pred_check
      _
    $region27: #{tpu_custom_call.1} parent=1 // pred_check_branch
      %157 = sbr.rel (0) target = $region29
    $region28: #{tpu_custom_call.1} parent=1 // pred_region
      %158 = dma.done [#allocation4], 256
    $region29: #{tpu_custom_call.1} parent=1 // pred_fallthru
      _
    %159 = vsyncpa [#allocation3], 1
    %160 = vsyncpa [#allocation6], 1
    %161 = vsyncpa [#allocation4], 1

</llo_original>
